<compile_context>
chip_gen: v7x
topology: tpu7x:2x2x1
jax: 0.10.0
libtpu: 0.0.40
codegen_flags: <defaults>
</compile_context>

<pallas_src>
import jax
import jax.numpy as jnp
from jax.experimental import pallas as pl
from jax.experimental.pallas import tpu as pltpu

ALPHA = 1.0
GAMMA = 2.0

_LANE = 128
_MAX_TILE_N = 8192
_STREAM_VMEM_BUDGET = 24 << 20   # bytes for the double-buffered logits stream


def _round_up(x, m):
    return (x + m - 1) // m * m


def _cdiv(a, b):
    return -(-a // b)


def _focal_partial_kernel(logits_ref, targets_ref, out_ref):
    """Accumulates per-sample (logsumexp - target_logit) into per-lane partials."""
    i = pl.program_id(1)

    @pl.when(i == 0)
    def _():
        out_ref[...] = jnp.zeros_like(out_ref)

    x = logits_ref[...].astype(jnp.float32)           # (C, tile_n), lane-dense
    t = targets_ref[...]                              # (1, tile_n) int32

    # Numerically stable per-sample logsumexp (reductions along the sublane/C axis).
    m = jnp.max(x, axis=0, keepdims=True)             # (1, tile_n)
    lse = m + jnp.log(jnp.sum(jnp.exp(x - m), axis=0, keepdims=True))

    # Target-logit gather on the VPU: sublane class-iota compare + select + sum.
    cls = jax.lax.broadcasted_iota(jnp.int32, x.shape, 0)               # (C, tile_n)
    tgt = jnp.sum(jnp.where(cls == t, x, 0.0), axis=0, keepdims=True)   # (1, tile_n)

    # Padded samples carry target = -1 -> contribute exactly 0.
    contrib = jnp.where(t >= 0, lse - tgt, 0.0)       # (1, tile_n)

    out_ref[...] += contrib[None]                     # resident (1,1,tile_n) accumulator


def _choose_tile_n(n, num_classes, itemsize):
    # Size the lane tile from the VMEM budget for 2 pipeline buffers of (C, tile_n).
    sublane = max(8, 32 // max(int(itemsize), 1))     # 8 for f32, 16 for bf16
    c_pad = _round_up(num_classes, sublane)
    bytes_per_lane_col = c_pad * int(itemsize) * 2    # 2 buffers
    tile = _STREAM_VMEM_BUDGET // max(bytes_per_lane_col, 1)
    tile = (tile // _LANE) * _LANE
    tile = min(tile, _MAX_TILE_N, _round_up(n, _LANE))
    return max(tile, _LANE)


def focal_loss(logits, targets, alpha=ALPHA, gamma=GAMMA, tile_n=None):
    """logits: (N, C) float32/bfloat16 logits, targets: (N,) int class indices.
    Returns the scalar focal loss (float32)."""
    n, num_classes = logits.shape
    targets = targets.astype(jnp.int32)

    if tile_n is None:
        tile_n = _choose_tile_n(n, num_classes, jnp.dtype(logits.dtype).itemsize)
    tile_n = _round_up(tile_n, _LANE)

    num_tiles = _cdiv(n, tile_n)
    # 2 TensorCores on v7x own one split each; a size-2 serial axis is harmless
    # on single-TC v5e/v6e.
    num_splits = 2 if num_tiles >= 2 else 1
    tiles_per_split = _cdiv(num_tiles, num_splits)
    total_tiles = num_splits * tiles_per_split
    n_pad = total_tiles * tile_n

    if n_pad != n:
        logits = jnp.pad(logits, ((0, n_pad - n), (0, 0)))
        targets = jnp.pad(targets, (0, n_pad - n), constant_values=-1)

    # Sample axis on lanes: (C, n_pad) logits stream, (1, n_pad) targets stream.
    # C is NOT padded in HBM (keeps the dominant byte stream minimal on v5e).
    logits_t = logits.T
    targets2d = targets.reshape(1, n_pad)

    partials = pl.pallas_call(
        _focal_partial_kernel,
        out_shape=jax.ShapeDtypeStruct((num_splits, 1, tile_n), jnp.float32),
        grid_spec=pltpu.PrefetchScalarGridSpec(
            num_scalar_prefetch=0,
            grid=(num_splits, tiles_per_split),
            in_specs=[
                # TODO(synk): if the logits DMA shows exposed at very large C,
                # add pipeline_mode=pl.Buffered(3) to this BlockSpec.
                pl.BlockSpec((num_classes, tile_n),
                             lambda c, i: (0, c * tiles_per_split + i)),
                pl.BlockSpec((1, tile_n),
                             lambda c, i: (0, c * tiles_per_split + i)),
            ],
            out_specs=pl.BlockSpec((1, 1, tile_n), lambda c, i: (c, 0, 0)),
        ),
        compiler_params=pltpu.CompilerParams(
            dimension_semantics=("parallel", "arbitrary"),
            vmem_limit_bytes=40 << 20),
    )(logits_t, targets2d)

    # Tiny epilogue outside the kernel: cross-lane/cross-split reduce and the
    # focal transform (a handful of scalar ops; keeps the two v7x TensorCores'
    # partial sums independent).
    ce = jnp.sum(partials) / jnp.float32(n)            # mean cross-entropy
    pt = jnp.exp(-ce)
    loss = jnp.float32(alpha) * (1.0 - pt) ** jnp.float32(gamma) * ce
    return loss.astype(jnp.float32)


def focal_loss_ref(logits, targets, alpha=ALPHA, gamma=GAMMA):
    # pure-JAX reference for validation
    logits = logits.astype(jnp.float32)
    lse = jax.scipy.special.logsumexp(logits, axis=-1)
    tgt = jnp.take_along_axis(logits, targets[:, None].astype(jnp.int32), axis=-1)[:, 0]
    ce = jnp.mean(lse - tgt)
    pt = jnp.exp(-ce)
    return alpha * (1.0 - pt) ** gamma * ce


if __name__ == "__main__":
    key = jax.random.PRNGKey(0)
    k1, k2, k3, k4 = jax.random.split(key, 4)

    # --- f32 logits, single tile / single split -------------------------------
    N, C = 256, 32
    logits = jax.random.normal(k1, (N, C), dtype=jnp.float32)
    targets = jax.random.randint(k2, (N,), 0, C, dtype=jnp.int32)

    out = focal_loss(logits, targets)
    jax.block_until_ready(out)
    ref = focal_loss_ref(logits, targets)
    assert jnp.allclose(out, ref, rtol=1e-4, atol=1e-4), (out, ref)

    # --- forced multi-tile + 2-way parallel split (accumulator path) ----------
    out_mt = focal_loss(logits, targets, tile_n=128)       # 2 splits x 1 tile
    jax.block_until_ready(out_mt)
    assert jnp.allclose(out_mt, ref, rtol=1e-4, atol=1e-4), (out_mt, ref)

    # --- bf16 logits, ragged N (padding / masking / multi-tile accumulation) --
    N2, C2 = 1000, 16
    logits2 = jax.random.normal(k3, (N2, C2), dtype=jnp.bfloat16)
    targets2 = jax.random.randint(k4, (N2,), 0, C2, dtype=jnp.int32)
    out2 = focal_loss(logits2, targets2, tile_n=128)        # 2 splits x 4 tiles, 24 pad rows
    jax.block_until_ready(out2)
    ref2 = focal_loss_ref(logits2.astype(jnp.float32), targets2)
    assert jnp.allclose(out2, ref2, rtol=2e-3, atol=2e-3), (out2, ref2)

    print("KERNEL_OK")
</pallas_src>

<mosaic_0001>
module attributes {stable_mosaic.version = 11 : i64} {
  func.func @_focal_partial_kernel(%arg0: i32, %arg1: i32, %arg2: memref<32x256xf32, #tpu.memory_space<vmem>>, %arg3: memref<1x256xi32, #tpu.memory_space<vmem>>, %arg4: memref<1x1x256xf32, #tpu.memory_space<vmem>>) attributes {dimension_semantics = [#tpu.dimension_semantics<parallel>, #tpu.dimension_semantics<arbitrary>], iteration_bounds = array<i64: 1, 1>, scalar_prefetch = 0 : i64, scratch_operands = 0 : i64, tpu.core_type = #tpu.core_type<tc>, window_params = [{transform_indices = @transform_0, window_bounds = array<i64: 32, 256>}, {transform_indices = @transform_1, window_bounds = array<i64: 1, 256>}, {transform_indices = @transform_2, window_bounds = array<i64: 1, 1, 256>}]} {
    %c0_i32 = arith.constant 0 : i32
    %0 = arith.cmpi eq, %arg1, %c0_i32 : i32
    %1 = arith.extui %0 : i1 to i32
    %c0_i32_0 = arith.constant 0 : i32
    %2 = arith.cmpi ne, %1, %c0_i32_0 : i32
    scf.if %2 {
      %cst_15 = arith.constant 0.000000e+00 : f32
      %30 = vector.broadcast %cst_15 : f32 to vector<1x1x256xf32>
      %c0_16 = arith.constant 0 : index
      %c0_17 = arith.constant 0 : index
      %c0_18 = arith.constant 0 : index
      %31 = vector.load %arg4[%c0_16, %c0_17, %c0_18] : memref<1x1x256xf32, #tpu.memory_space<vmem>>, vector<1x1x256xf32>
      tpu.vector_store %arg4[%c0_16, %c0_17, %c0_18], %30 {strides = array<i32>} : memref<1x1x256xf32, #tpu.memory_space<vmem>>, vector<1x1x256xf32>,
    } else {
    }
    %c0 = arith.constant 0 : index
    %c0_1 = arith.constant 0 : index
    %3 = vector.load %arg2[%c0, %c0_1] : memref<32x256xf32, #tpu.memory_space<vmem>>, vector<32x256xf32>
    %c0_2 = arith.constant 0 : index
    %c0_3 = arith.constant 0 : index
    %4 = vector.load %arg3[%c0_2, %c0_3] : memref<1x256xi32, #tpu.memory_space<vmem>>, vector<1x256xi32>
    %cst = arith.constant dense<0xFF800000> : vector<256xf32>
    %5 = vector.multi_reduction <maximumf>, %3, %cst [0] : vector<32x256xf32> to vector<256xf32>
    %6 = vector.shape_cast %5 : vector<256xf32> to vector<1x256xf32>
    %7 = vector.broadcast %6 : vector<1x256xf32> to vector<32x256xf32>
    %8 = arith.subf %3, %7 : vector<32x256xf32>
    %9 = math.exp %8 : vector<32x256xf32>
    %cst_4 = arith.constant dense<0.000000e+00> : vector<256xf32>
    %10 = vector.multi_reduction <add>, %9, %cst_4 [0] : vector<32x256xf32> to vector<256xf32>
    %11 = vector.shape_cast %10 : vector<256xf32> to vector<1x256xf32>
    %12 = math.log %11 : vector<1x256xf32>
    %13 = arith.addf %6, %12 : vector<1x256xf32>
    %14 = tpu.iota {dimensions = array<i32: 0>} : vector<32x256xi32>
    %15 = vector.broadcast %4 : vector<1x256xi32> to vector<32x256xi32>
    %16 = arith.cmpi eq, %14, %15 : vector<32x256xi32>
    %cst_5 = arith.constant 0.000000e+00 : f32
    %17 = vector.broadcast %cst_5 : f32 to vector<32x256xf32>
    %18 = arith.select %16, %3, %17 : vector<32x256xi1>, vector<32x256xf32>
    %cst_6 = arith.constant dense<0.000000e+00> : vector<256xf32>
    %19 = vector.multi_reduction <add>, %18, %cst_6 [0] : vector<32x256xf32> to vector<256xf32>
    %20 = vector.shape_cast %19 : vector<256xf32> to vector<1x256xf32>
    %c0_i32_7 = arith.constant 0 : i32
    %21 = vector.broadcast %c0_i32_7 : i32 to vector<1x256xi32>
    %22 = arith.cmpi sge, %4, %21 : vector<1x256xi32>
    %23 = arith.subf %13, %20 : vector<1x256xf32>
    %cst_8 = arith.constant 0.000000e+00 : f32
    %24 = vector.broadcast %cst_8 : f32 to vector<1x256xf32>
    %25 = arith.select %22, %23, %24 : vector<1x256xi1>, vector<1x256xf32>
    %c0_9 = arith.constant 0 : index
    %c0_10 = arith.constant 0 : index
    %c0_11 = arith.constant 0 : index
    %26 = vector.load %arg4[%c0_9, %c0_10, %c0_11] : memref<1x1x256xf32, #tpu.memory_space<vmem>>, vector<1x1x256xf32>
    %27 = vector.shape_cast %25 : vector<1x256xf32> to vector<1x1x256xf32>
    %28 = arith.addf %26, %27 : vector<1x1x256xf32>
    %c0_12 = arith.constant 0 : index
    %c0_13 = arith.constant 0 : index
    %c0_14 = arith.constant 0 : index
    %29 = vector.load %arg4[%c0_12, %c0_13, %c0_14] : memref<1x1x256xf32, #tpu.memory_space<vmem>>, vector<1x1x256xf32>
    tpu.vector_store %arg4[%c0_12, %c0_13, %c0_14], %28 {strides = array<i32>} : memref<1x1x256xf32, #tpu.memory_space<vmem>>, vector<1x1x256xf32>,
    return
  }
  func.func @transform_0(%arg0: i32, %arg1: i32) -> (i32, i32) {
    %c1_i32 = arith.constant 1 : i32
    %0 = arith.muli %arg0, %c1_i32 : i32
    %1 = arith.addi %0, %arg1 : i32
    %c0_i32 = arith.constant 0 : i32
    %c0_i32_0 = arith.constant 0 : i32
    return %c0_i32, %1 : i32, i32
  }
  func.func @transform_1(%arg0: i32, %arg1: i32) -> (i32, i32) {
    %c1_i32 = arith.constant 1 : i32
    %0 = arith.muli %arg0, %c1_i32 : i32
    %1 = arith.addi %0, %arg1 : i32
    %c0_i32 = arith.constant 0 : i32
    %c0_i32_0 = arith.constant 0 : i32
    return %c0_i32, %1 : i32, i32
  }
  func.func @transform_2(%arg0: i32, %arg1: i32) -> (i32, i32, i32) {
    %c0_i32 = arith.constant 0 : i32
    %c0_i32_0 = arith.constant 0 : i32
    %c0_i32_1 = arith.constant 0 : i32
    return %arg0, %c0_i32, %c0_i32_0 : i32, i32, i32
  }
}

</mosaic_0001>

<llo_original>
// kernel: tpu_custom_call.1
$region0: #{tpu_custom_call.1}
  #allocation0 [shape = 'u32[]', space=smem, size = 0x4, offset = 0x4, fixed_abs, tag = 'smem constant byte address 0x4 - core index']
  #allocation1 [shape = 'u32[144,128]{1,0:T(1,128)}', space=vmem, size = 0x12000, scoped, tag = 'internal scratch']
  %s0 = inlined_call_operand.hbm [shape: f32[32,256], index: 0, kind: input, shape index: {}]
  %s1 = inlined_call_operand.vmem [shape: s32[1,256], index: 1, kind: input, shape index: {}]
  %s2 = inlined_call_operand.hbm [shape: f32[1,1,256], index: 2, kind: output, shape index: {}]
  %s3 = sld [smem:[#allocation0]]
  $region26: #{tpu_custom_call.1} parent=0
    _
  %s5 = ssub.s32 1, %s3
  %s6 = scalar_select 0, %s5, %s3
  $region1: #{tpu_custom_call.1} parent=0
    #allocation2 [shape = 'u8[32768]{0}', space=vmem, size = 0x8000, scoped, tag = 'input window, operand 0, single buffered']
    #allocation3 [shape = 's32[1]{0}', space=sflag, size = 0x4, scoped, tag = 'scoped memory for tpu_custom_call.1']
    #allocation4 [shape = 's32[1]{0}', space=sflag, size = 0x4, scoped, tag = 'scoped memory for tpu_custom_call.1']
    #allocation5 [shape = 'u8[1024]{0}', space=vmem, size = 0x400, scoped, tag = 'output window, operand 0, single buffered']
    %7 = vsyncpa [#allocation3], 0
    %8 = vsyncpa [#allocation4], 0
    // Predicated region
    $region2: #{tpu_custom_call.1} parent=1 // pred_check
      _
    $region3: #{tpu_custom_call.1} parent=1 // pred_check_branch
      %10 = sbr.rel (0) target = $region5
    $region4: #{tpu_custom_call.1} parent=1 // pred_region
      %s11 = sadd.s32 0, 0
      %s12 = smul.u32 2, %s11
      %s14 = ssub.s32 1024, 1024
      %15 = vsyncadd [#allocation3], %s14
      %s16 = smul.addr %s12, 128
      %s17 = scalar_lea.hbm %s0, %s16
      %s18 = sshll.u32 [#allocation2], 4
      %s19 = int_to_ptr.vmem [resolvable:$true] %s18
      %24 = dma.hbm_to_vmem [thread:$0]  %s17, 1024, %s19, [#allocation3], 256, 256, 16
    $region5: #{tpu_custom_call.1} parent=1 // pred_fallthru
      _
    // Predicated region
    $region6: #{tpu_custom_call.1} parent=1 // pred_check
      _
    $region7: #{tpu_custom_call.1} parent=1 // pred_check_branch
      %26 = sbr.rel (0) target = $region9
    $region8: #{tpu_custom_call.1} parent=1 // pred_region
      %s27 = sadd.s32 0, 0
      %s28 = smul.u32 2, %s27
      %p29 = scmp.lt.s32.totalorder %s28, 1
      %s30 = scalar_select %p29, %s28, 1
      %s31 = scalar_lea.vmem %s1, %s30
      %s32 = sadd.s32 0, 0
      %s33 = smul.u32 2, %s32
    $region9: #{tpu_custom_call.1} parent=1 // pred_fallthru
      _
    // Predicated region
    $region10: #{tpu_custom_call.1} parent=1 // pred_check
      _
    $region11: #{tpu_custom_call.1} parent=1 // pred_check_branch
      %35 = sbr.rel (0) target = $region13
    $region12: #{tpu_custom_call.1} parent=1 // pred_region
      %36 = dma.done [#allocation3], 1024
    $region13: #{tpu_custom_call.1} parent=1 // pred_fallthru
      _
    %s37 = sadd.s32 0, 0
    %s38 = smul.u32 2, %s37
    %p39 = scmp.lt.s32.totalorder %s38, 1
    %s40 = scalar_select %p39, %s38, 1
    %s41 = scalar_lea.vmem %s1, %s40
    %s42 = sadd.s32 0, 0
    %s43 = smul.u32 2, %s42
    %s44 = sadd.s32 0, 0
    %s45 = smul.u32 2, %s44
    %p46 = scmp.lt.s32.totalorder %s45, 1
    %s47 = scalar_select %p46, %s45, 1
    %s48 = scalar_lea.vmem %s1, %s47
    %s49 = sadd.s32 0, 0
    %s50 = smul.u32 2, %s49
    %p51 = scmp.eq.s32.totalorder 0, 0
    // Predicated region
    $region14: #{tpu_custom_call.1} parent=1 // pred_check
      %p52 = pneg %p51
    $region15: #{tpu_custom_call.1} parent=1 // pred_check_branch
      %54 = sbr.rel (%p52) target = $region17
    $region16: #{tpu_custom_call.1} parent=1 // pred_region
      %v55 = vlaneseq
      %vm56 = vcmp.ge.s32.totalorder %v55, 0
      %vm57 = vcmp.lt.s32.totalorder %v55, 256
      %vm58 = vmand %vm56, %vm57
      %59 = vst.msk [vmem:[#allocation5] sm:$0x3] %vm58, 0.0
    $region17: #{tpu_custom_call.1} parent=1 // pred_fallthru
      _
    %v60 = vld [vmem:[#allocation2] sm:$0xff]
    %v61 = vld [vmem:[#allocation2 + $0x8] sm:$0xff]
    %v62 = vld [vmem:[#allocation2 + $0x10] sm:$0xff]
    %v63 = vld [vmem:[#allocation2 + $0x18] sm:$0xff]
    %v64 = vld [vmem:[#allocation2 + $0x20] sm:$0xff]
    %v65 = vld [vmem:[#allocation2 + $0x28] sm:$0xff]
    %v66 = vld [vmem:[#allocation2 + $0x30] sm:$0xff]
    %v67 = vld [vmem:[#allocation2 + $0x38] sm:$0xff]
    %v68 = vld [vmem:[%s48] sm:$0x3]
    %v69 = vmax.f32 %v60, %v64
    %v70 = vmax.f32 %v62, %v66
    %v71 = vmax.f32 %v69, %v70
    %v72 = vrot.slane %v71, 4
    %v73 = vmax.f32 %v71, %v72
    %v74 = vrot.slane %v73, 2
    %v75 = vmax.f32 %v73, %v74
    %v76 = vrot.slane %v75, 1
    %v77 = vmax.f32 %v75, %v76
    %v78 = vmax.f32 %v61, %v65
    %v79 = vmax.f32 %v63, %v67
    %v80 = vmax.f32 %v78, %v79
    %v81 = vrot.slane %v80, 4
    %v82 = vmax.f32 %v80, %v81
    %v83 = vrot.slane %v82, 2
    %v84 = vmax.f32 %v82, %v83
    %v85 = vrot.slane %v84, 1
    %v86 = vmax.f32 %v84, %v85
    %v87 = vsub.f32 %v60, %v77
    %v88 = vsub.f32 %v61, %v86
    %v89 = vsub.f32 %v62, %v77
    %v90 = vsub.f32 %v63, %v86
    %v91 = vsub.f32 %v64, %v77
    %v92 = vsub.f32 %v65, %v86
    %v93 = vsub.f32 %v66, %v77
    %v94 = vsub.f32 %v67, %v86
    %v95 = vmul.f32 %v87, 1.442695
    %v96 = vpow.pop %v95
    %v97 = vmul.f32 %v88, 1.442695
    %v98 = vpow.pop %v97
    %v99 = vmul.f32 %v89, 1.442695
    %v100 = vpow.pop %v99
    %v101 = vmul.f32 %v90, 1.442695
    %v102 = vpow.pop %v101
    %v103 = vmul.f32 %v91, 1.442695
    %v104 = vpow.pop %v103
    %v105 = vmul.f32 %v92, 1.442695
    %v106 = vpow.pop %v105
    %v107 = vmul.f32 %v93, 1.442695
    %v108 = vpow.pop %v107
    %v109 = vmul.f32 %v94, 1.442695
    %v110 = vpow.pop %v109
    %v111 = vadd.f32 %v96, %v100
    %v112 = vadd.f32 %v111, %v104
    %v113 = vadd.f32 %v112, %v108
    %v114 = vrot.slane %v113, 4
    %v115 = vadd.f32 %v113, %v114
    %v116 = vrot.slane %v115, 2
    %v117 = vadd.f32 %v115, %v116
    %v118 = vrot.slane %v117, 1
    %v119 = vadd.f32 %v117, %v118
    %v120 = vadd.f32 %v98, %v102
    %v121 = vadd.f32 %v120, %v106
    %v122 = vadd.f32 %v121, %v110
    %v123 = vrot.slane %v122, 4
    %v124 = vadd.f32 %v122, %v123
    %v125 = vrot.slane %v124, 2
    %v126 = vadd.f32 %v124, %v125
    %v127 = vrot.slane %v126, 1
    %v128 = vadd.f32 %v126, %v127
    %v129 = vlog2.pop %v119
    %v130 = vmul.f32 %v129, 0.6931472
    %v131 = vlog2.pop %v128
    %v132 = vmul.f32 %v131, 0.6931472
    %v133 = vadd.f32 %v77, %v130
    %v134 = vadd.f32 %v86, %v132
    %v135 = vlaneseq
    %v136 = vshrl.u32 %v135, 7
    %v137 = vadd.s32 %v136, 8
    %v138 = vadd.s32 %v136, 16
    %v139 = vadd.s32 %v136, 24
    %v140 = vlaneseq
    %v141 = vshrl.u32 %v140, 7
    %v142 = vsub.s32 0, %v141
    %v143 = vrot.slane %v68, %v142
    %v144 = vlaneseq
    %v145 = vshrl.u32 %v144, 7
    %v146 = vsub.s32 1, %v145
    %v147 = vrot.slane %v68, %v146
    %vm148 = vcmp.eq.s32.totalorder %v136, %v143
    %vm149 = vcmp.eq.s32.totalorder %v136, %v147
    %vm150 = vcmp.eq.s32.totalorder %v137, %v143
    %vm151 = vcmp.eq.s32.totalorder %v137, %v147
    %vm152 = vcmp.eq.s32.totalorder %v138, %v143
    %vm153 = vcmp.eq.s32.totalorder %v138, %v147
    %vm154 = vcmp.eq.s32.totalorder %v139, %v143
    %vm155 = vcmp.eq.s32.totalorder %v139, %v147
    %v156 = vsel %vm148, %v60, 0.0
    %v157 = vsel %vm149, %v61, 0.0
    %v158 = vsel %vm150, %v62, 0.0
    %v159 = vsel %vm151, %v63, 0.0
    %v160 = vsel %vm152, %v64, 0.0
    %v161 = vsel %vm153, %v65, 0.0
    %v162 = vsel %vm154, %v66, 0.0
    %v163 = vsel %vm155, %v67, 0.0
    %v164 = vadd.f32 %v156, %v158
    %v165 = vadd.f32 %v164, %v160
    %v166 = vadd.f32 %v165, %v162
    %v167 = vrot.slane %v166, 4
    %v168 = vadd.f32 %v166, %v167
    %v169 = vrot.slane %v168, 2
    %v170 = vadd.f32 %v168, %v169
    %v171 = vrot.slane %v170, 1
    %v172 = vadd.f32 %v170, %v171
    %v173 = vadd.f32 %v157, %v159
    %v174 = vadd.f32 %v173, %v161
    %v175 = vadd.f32 %v174, %v163
    %v176 = vrot.slane %v175, 4
    %v177 = vadd.f32 %v175, %v176
    %v178 = vrot.slane %v177, 2
    %v179 = vadd.f32 %v177, %v178
    %v180 = vrot.slane %v179, 1
    %v181 = vadd.f32 %v179, %v180
    %vm182 = vcmp.ge.s32.totalorder %v68, 0
    %v183 = vsub.f32 %v133, %v172
    %v184 = vsub.f32 %v134, %v181
    %v187 = vcombine.low %v183, %v184
    %v189 = vunpack.c.l.s4 1966171168
    %v190 = vunpack.c.0.s8 %v189
    %v191 = vlaneseq
    %v192 = vshrl.u32 %v191, 7
    %v193 = vsub.s32 %v190, %v192
    %v194 = vrot.slane %v187, %v193
    %v196 = vunpack.c.l.s4 1966171168
    %v197 = vunpack.c.0.s8 %v196
    %v198 = vlaneseq
    %v199 = vshrl.u32 %v198, 7
    %v200 = vsub.s32 %v197, %v199
    %v201 = vrot.slane %v194, %v200
    %v203 = vsel %vm182, %v201, 0.0
    %v204 = vld [vmem:[#allocation5] sm:$0x3]
    %v205 = vadd.f32 %v204, %v203
    %v206 = vlaneseq
    %vm207 = vcmp.ge.s32.totalorder %v206, 0
    %vm208 = vcmp.lt.s32.totalorder %v206, 256
    %vm209 = vmand %vm207, %vm208
    %210 = vst.msk [vmem:[#allocation5] sm:$0x3] %vm209, %v205
    // Predicated region
    $region18: #{tpu_custom_call.1} parent=1 // pred_check
      _
    $region19: #{tpu_custom_call.1} parent=1 // pred_check_branch
      %212 = sbr.rel (0) target = $region21
    $region20: #{tpu_custom_call.1} parent=1 // pred_region
      %s214 = ssub.s32 32, 32
      %215 = vsyncadd [#allocation4], %s214
      %s217 = sshll.u32 [#allocation5], 4
      %s218 = int_to_ptr.vmem [resolvable:$true] %s217
      %220 = dma.vmem_to_hbm [thread:$0]  %s218, 32, %s2, [#allocation4]
    $region21: #{tpu_custom_call.1} parent=1 // pred_fallthru
      _
    // Predicated region
    $region22: #{tpu_custom_call.1} parent=1 // pred_check
      _
    $region23: #{tpu_custom_call.1} parent=1 // pred_check_branch
      %222 = sbr.rel (0) target = $region25
    $region24: #{tpu_custom_call.1} parent=1 // pred_region
      %223 = dma.done [#allocation4], 32
    $region25: #{tpu_custom_call.1} parent=1 // pred_fallthru
      _
    %224 = vsyncpa [#allocation3], 1
    %225 = vsyncpa [#allocation4], 1

</llo_original>
